<compile_context>
chip_gen: v7x
topology: tpu7x:2x2x1
jax: 0.10.0
libtpu: 0.0.40
codegen_flags: <defaults>
</compile_context>

<pallas_src>
import math

import jax
import jax.numpy as jnp
from jax import lax
from jax.experimental import pallas as pl
from jax.experimental.pallas import tpu as pltpu

# ---- problem sizes (small, consistent with the module) ----
B, N, D, H = 2, 8, 32, 4
HD = D // H
EPS = 1e-5  # PyTorch nn.LayerNorm default eps


def _layer_norm(v, gamma, beta):
    mu = jnp.mean(v, axis=-1, keepdims=True)
    cent = v - mu
    var = jnp.mean(cent * cent, axis=-1, keepdims=True)
    return cent * lax.rsqrt(var + EPS) * gamma + beta


def _make_kernel(rows, d, h):
    hd = d // h

    def kernel(x_ref, wqkv_ref, wout_ref, vec_ref, o_ref):
        x = x_ref[...]                       # [rows, d] f32
        w_qkv = wqkv_ref[...]                # [d, 3d]  bf16 (scale folded into Q cols)

        # wo / w1 / w2: sublane-aligned row slices of the packed [3d, d] slab.
        wo = wout_ref[0 * d:1 * d, :]
        w1 = wout_ref[1 * d:2 * d, :]
        w2 = wout_ref[2 * d:3 * d, :]

        # Pre-broadcast vectors (each already replicated to `rows` rows) and
        # the precomputed block-diagonal 0/1 mask. Static slices on the ref.
        b_qkv = vec_ref[0 * rows:1 * rows, :]          # [rows, 3d]
        bo    = vec_ref[1 * rows:2 * rows, 0:d]
        b1    = vec_ref[2 * rows:3 * rows, 0:d]
        b2    = vec_ref[3 * rows:4 * rows, 0:d]
        g1    = vec_ref[4 * rows:5 * rows, 0:d]
        be1   = vec_ref[5 * rows:6 * rows, 0:d]
        g2    = vec_ref[6 * rows:7 * rows, 0:d]
        be2   = vec_ref[7 * rows:8 * rows, 0:d]
        mask  = vec_ref[8 * rows:9 * rows, 0:rows]     # [rows, rows] 0/1 f32

        # ---- fused Q/K/V projection: one wide MXU matmul + one bias add ----
        xb = x.astype(jnp.bfloat16)
        qkv = jnp.dot(xb, w_qkv, preferred_element_type=jnp.float32) + b_qkv
        qkvb = qkv.astype(jnp.bfloat16)                # [rows, 3d]

        # ---- per-head attention, output projection folded per head ----
        mh = jnp.zeros((rows, d), jnp.float32)
        for hi in range(h):                            # static unroll (h small)
            qsl = slice(hi * hd, (hi + 1) * hd)
            ksl = slice(d + hi * hd, d + (hi + 1) * hd)
            vsl = slice(2 * d + hi * hd, 2 * d + (hi + 1) * hd)
            s = lax.dot_general(qkvb[:, qsl], qkvb[:, ksl],
                                (((1,), (1,)), ((), ())),
                                preferred_element_type=jnp.float32)  # [rows, rows]
            s = s - jnp.max(s, axis=-1, keepdims=True)   # stable softmax
            p = jnp.exp(s) * mask                        # zero cross-set probs (exact)
            p = p * pl.reciprocal(jnp.sum(p, axis=-1, keepdims=True), approx=True)
            head = jnp.dot(p.astype(jnp.bfloat16), qkvb[:, vsl],
                           preferred_element_type=jnp.float32)       # [rows, hd]
            mh = mh + jnp.dot(head.astype(jnp.bfloat16), wo[qsl, :],
                              preferred_element_type=jnp.float32)    # [rows, d]
        mh = mh + bo

        # ---- residual + LayerNorm1 ----
        h1 = _layer_norm(x + mh, g1, be1)

        # ---- rff: Linear -> ReLU -> Linear ----
        r = jnp.dot(h1.astype(jnp.bfloat16), w1,
                    preferred_element_type=jnp.float32) + b1
        r = jnp.maximum(r, 0.0)
        r = jnp.dot(r.astype(jnp.bfloat16), w2,
                    preferred_element_type=jnp.float32) + b2

        # ---- residual + LayerNorm2 ----
        o_ref[...] = _layer_norm(h1 + r, g2, be2).astype(o_ref.dtype)

    return kernel


def pack_params(params, *, rows, n, num_heads):
    """Pack all 16 tiny parameters into three slabs (done once, host-side).

    rows = (batch elements per grid step) * n; vectors are pre-replicated to
    `rows` sublane rows and the block-diagonal 0/1 attention mask for one
    grid step is precomputed and appended.
    """
    d = params["wq"].shape[0]
    hd = d // num_heads
    scale = 1.0 / math.sqrt(hd)
    assert rows % n == 0 and rows <= 3 * d  # mask must fit the slab lane width

    # Fused QKV weight / bias with 1/sqrt(hd) folded into the Q part.
    w_qkv = jnp.concatenate([params["wq"] * scale, params["wk"], params["wv"]],
                            axis=1).astype(jnp.bfloat16)              # [d, 3d]
    w_out = jnp.concatenate([params["wo"], params["w1"], params["w2"]],
                            axis=0).astype(jnp.bfloat16)              # [3d, d]

    b_qkv = jnp.concatenate([params["bq"] * scale, params["bk"], params["bv"]],
                            axis=1).astype(jnp.float32)               # [1, 3d]
    b_qkv = jnp.broadcast_to(b_qkv, (rows, 3 * d))

    def rep_pad(v):  # [1, d] -> [rows, 3d] (replicate rows, zero-pad lanes)
        v = jnp.broadcast_to(v.astype(jnp.float32), (rows, d))
        return jnp.pad(v, ((0, 0), (0, 2 * d)))

    rest = [rep_pad(params[k])
            for k in ("bo", "b1", "b2", "g1", "be1", "g2", "be2")]

    idx = jnp.arange(rows) // n
    mask = (idx[:, None] == idx[None, :]).astype(jnp.float32)         # [rows, rows]
    mask = jnp.pad(mask, ((0, 0), (0, 3 * d - rows)))                 # [rows, 3d]

    vec = jnp.concatenate([b_qkv] + rest + [mask], axis=0)            # [9*rows, 3d]
    return w_qkv, w_out, vec


def set_attention_block(x, packed, num_heads=H, batch_per_step=None):
    b, n, d = x.shape
    if batch_per_step is None:
        batch_per_step = b                 # tiny case: everything in one step
    assert b % batch_per_step == 0
    rows = batch_per_step * n
    steps = b // batch_per_step
    bn = b * n
    hd = d // num_heads

    w_qkv, w_out, vec = packed
    assert vec.shape == (9 * rows, 3 * d)

    x2 = x.reshape(bn, d)                  # contiguous: free in HBM
    kernel = _make_kernel(rows, d, num_heads)

    flops = steps * (2 * rows * d * 3 * d                      # fused QKV
                     + num_heads * (4 * rows * rows * hd       # scores + p@v
                                    + 2 * rows * hd * d)       # per-head out proj
                     + 4 * rows * d * d)                       # rff
    transcendentals = steps * (num_heads * rows * rows + 3 * rows)
    bytes_accessed = (x2.size * 4 + bn * d * 4
                      + w_qkv.size * 2 + w_out.size * 2 + vec.size * 4)

    out = pl.pallas_call(
        kernel,
        out_shape=jax.ShapeDtypeStruct((bn, d), x.dtype),
        grid_spec=pltpu.PrefetchScalarGridSpec(
            num_scalar_prefetch=0,
            grid=(steps,),                 # groups of whole sets per step
            in_specs=[
                pl.BlockSpec((rows, d), lambda i: (i, 0)),          # activations
                pl.BlockSpec((d, 3 * d), lambda i: (0, 0)),         # VMEM-resident
                pl.BlockSpec((3 * d, d), lambda i: (0, 0)),         # VMEM-resident
                pl.BlockSpec((9 * rows, 3 * d), lambda i: (0, 0)),  # VMEM-resident
            ],
            out_specs=pl.BlockSpec((rows, d), lambda i: (i, 0)),
        ),
        compiler_params=pltpu.CompilerParams(
            dimension_semantics=("parallel",)),   # independent groups (megacore)
        cost_estimate=pl.CostEstimate(
            flops=flops, transcendentals=transcendentals,
            bytes_accessed=bytes_accessed),
    )(x2, w_qkv, w_out, vec)
    return out.reshape(b, n, d)


# ---------------- deterministic parameter init (synthetic) ----------------
def init_params(key):
    ks = jax.random.split(key, 12)

    def linear(kw, kb, d_in, d_out):
        w = jax.random.normal(kw, (d_in, d_out), jnp.float32) / math.sqrt(d_in)
        b = 0.01 * jax.random.normal(kb, (1, d_out), jnp.float32)
        return w, b

    wq, bq = linear(ks[0], ks[1], D, D)
    wk, bk = linear(ks[2], ks[3], D, D)
    wv, bv = linear(ks[4], ks[5], D, D)
    wo, bo = linear(ks[6], ks[7], D, D)
    w1, b1 = linear(ks[8], ks[9], D, D)
    w2, b2 = linear(ks[10], ks[11], D, D)
    ones = jnp.ones((1, D), jnp.float32)
    zeros = jnp.zeros((1, D), jnp.float32)
    return dict(wq=wq, bq=bq, wk=wk, bk=bk, wv=wv, bv=bv, wo=wo, bo=bo,
                g1=ones, be1=zeros, w1=w1, b1=b1, w2=w2, b2=b2,
                g2=ones, be2=zeros)


# ---------------- pure-JAX reference for correctness check ----------------
def reference(x, p):
    b, n, d = x.shape

    def ln(v, g, be):
        mu = v.mean(-1, keepdims=True)
        var = ((v - mu) ** 2).mean(-1, keepdims=True)
        return (v - mu) / jnp.sqrt(var + EPS) * g + be

    q = x @ p["wq"] + p["bq"]
    k = x @ p["wk"] + p["bk"]
    v = x @ p["wv"] + p["bv"]
    qh = q.reshape(b, n, H, HD)
    kh = k.reshape(b, n, H, HD)
    vh = v.reshape(b, n, H, HD)
    s = jnp.einsum("bnhk,bmhk->bhnm", qh, kh, precision="highest") / math.sqrt(HD)
    pmat = jax.nn.softmax(s, axis=-1)
    att = jnp.einsum("bhnm,bmhk->bnhk", pmat, vh,
                     precision="highest").reshape(b, n, d)
    mh = att @ p["wo"] + p["bo"]
    h1 = ln(x + mh, p["g1"], p["be1"])
    r = jnp.maximum(h1 @ p["w1"] + p["b1"], 0.0) @ p["w2"] + p["b2"]
    return ln(h1 + r, p["g2"], p["be2"])


if __name__ == "__main__":
    key = jax.random.PRNGKey(0)
    kx, kp = jax.random.split(key)
    x = jax.random.normal(kx, (B, N, D), jnp.float32)
    params = init_params(kp)

    rows = B * N  # default: the whole (tiny) problem in a single grid step
    packed = pack_params(params, rows=rows, n=N, num_heads=H)

    out = jax.block_until_ready(set_attention_block(x, packed, num_heads=H))
    ref = jax.block_until_ready(reference(x, params))

    assert out.shape == (B, N, D)
    max_diff = jnp.max(jnp.abs(out - ref))
    # bf16 matmul operands + approx reciprocal loosen accuracy slightly.
    assert jnp.allclose(out, ref, atol=2e-2, rtol=2e-2), (
        f"max abs diff {max_diff}")

    print("KERNEL_OK")
</pallas_src>

<mosaic_0001>
module attributes {stable_mosaic.version = 11 : i64} {
  func.func @kernel(%arg0: i32, %arg1: memref<16x32xf32, #tpu.memory_space<vmem>>, %arg2: memref<32x96xbf16, #tpu.memory_space<vmem>>, %arg3: memref<96x32xbf16, #tpu.memory_space<vmem>>, %arg4: memref<144x96xf32, #tpu.memory_space<vmem>>, %arg5: memref<16x32xf32, #tpu.memory_space<vmem>>) attributes {dimension_semantics = [#tpu.dimension_semantics<parallel>], iteration_bounds = array<i64: 1>, scalar_prefetch = 0 : i64, scratch_operands = 0 : i64, tpu.core_type = #tpu.core_type<tc>, window_params = [{transform_indices = @transform_0, window_bounds = array<i64: 16, 32>}, {pipeline_mode = #tpu.pipeline_mode<synchronous>, transform_indices = @transform_1, window_bounds = array<i64: 32, 96>}, {pipeline_mode = #tpu.pipeline_mode<synchronous>, transform_indices = @transform_2, window_bounds = array<i64: 96, 32>}, {pipeline_mode = #tpu.pipeline_mode<synchronous>, transform_indices = @transform_3, window_bounds = array<i64: 144, 96>}, {transform_indices = @transform_4, window_bounds = array<i64: 16, 32>}]} {
    %c0 = arith.constant 0 : index
    %c0_0 = arith.constant 0 : index
    %0 = vector.load %arg1[%c0, %c0_0] : memref<16x32xf32, #tpu.memory_space<vmem>>, vector<16x32xf32>
    %c0_1 = arith.constant 0 : index
    %c0_2 = arith.constant 0 : index
    %1 = vector.load %arg2[%c0_1, %c0_2] : memref<32x96xbf16, #tpu.memory_space<vmem>>, vector<32x96xbf16>
    %c0_3 = arith.constant 0 : index
    %c0_4 = arith.constant 0 : index
    %2 = vector.load %arg3[%c0_3, %c0_4] : memref<96x32xbf16, #tpu.memory_space<vmem>>, vector<32x32xbf16>
    %c32 = arith.constant 32 : index
    %c0_5 = arith.constant 0 : index
    %3 = vector.load %arg3[%c32, %c0_5] : memref<96x32xbf16, #tpu.memory_space<vmem>>, vector<32x32xbf16>
    %c64 = arith.constant 64 : index
    %c0_6 = arith.constant 0 : index
    %4 = vector.load %arg3[%c64, %c0_6] : memref<96x32xbf16, #tpu.memory_space<vmem>>, vector<32x32xbf16>
    %c0_7 = arith.constant 0 : index
    %c0_8 = arith.constant 0 : index
    %5 = vector.load %arg4[%c0_7, %c0_8] : memref<144x96xf32, #tpu.memory_space<vmem>>, vector<16x96xf32>
    %c16 = arith.constant 16 : index
    %c0_9 = arith.constant 0 : index
    %6 = vector.load %arg4[%c16, %c0_9] : memref<144x96xf32, #tpu.memory_space<vmem>>, vector<16x32xf32>
    %c32_10 = arith.constant 32 : index
    %c0_11 = arith.constant 0 : index
    %7 = vector.load %arg4[%c32_10, %c0_11] : memref<144x96xf32, #tpu.memory_space<vmem>>, vector<16x32xf32>
    %c48 = arith.constant 48 : index
    %c0_12 = arith.constant 0 : index
    %8 = vector.load %arg4[%c48, %c0_12] : memref<144x96xf32, #tpu.memory_space<vmem>>, vector<16x32xf32>
    %c64_13 = arith.constant 64 : index
    %c0_14 = arith.constant 0 : index
    %9 = vector.load %arg4[%c64_13, %c0_14] : memref<144x96xf32, #tpu.memory_space<vmem>>, vector<16x32xf32>
    %c80 = arith.constant 80 : index
    %c0_15 = arith.constant 0 : index
    %10 = vector.load %arg4[%c80, %c0_15] : memref<144x96xf32, #tpu.memory_space<vmem>>, vector<16x32xf32>
    %c96 = arith.constant 96 : index
    %c0_16 = arith.constant 0 : index
    %11 = vector.load %arg4[%c96, %c0_16] : memref<144x96xf32, #tpu.memory_space<vmem>>, vector<16x32xf32>
    %c112 = arith.constant 112 : index
    %c0_17 = arith.constant 0 : index
    %12 = vector.load %arg4[%c112, %c0_17] : memref<144x96xf32, #tpu.memory_space<vmem>>, vector<16x32xf32>
    %c128 = arith.constant 128 : index
    %c0_18 = arith.constant 0 : index
    %13 = vector.load %arg4[%c128, %c0_18] : memref<144x96xf32, #tpu.memory_space<vmem>>, vector<16x16xf32>
    %14 = arith.truncf %0 : vector<16x32xf32> to vector<16x32xbf16>
    %cst = arith.constant dense<0.000000e+00> : vector<16x96xf32>
    %15 = tpu.matmul %14, %1, %cst {dimension_numbers = #tpu.dot_dimension_numbers<[1], [0], [0], [1], [0, 0, 1, 1], [], []>} : vector<16x32xbf16>, vector<32x96xbf16>, vector<16x96xf32> -> vector<16x96xf32>
    %16 = arith.addf %15, %5 : vector<16x96xf32>
    %17 = arith.truncf %16 : vector<16x96xf32> to vector<16x96xbf16>
    %cst_19 = arith.constant 0.000000e+00 : f32
    %18 = vector.broadcast %cst_19 : f32 to vector<16x32xf32>
    %19 = vector.extract_strided_slice %17 {offsets = [0, 0], sizes = [16, 8], strides = [1, 1]} : vector<16x96xbf16> to vector<16x8xbf16>
    %20 = vector.extract_strided_slice %17 {offsets = [0, 32], sizes = [16, 8], strides = [1, 1]} : vector<16x96xbf16> to vector<16x8xbf16>
    %cst_20 = arith.constant dense<0.000000e+00> : vector<16x16xf32>
    %21 = tpu.matmul %19, %20, %cst_20 {dimension_numbers = #tpu.dot_dimension_numbers<[1], [1], [0], [0], [0, 0, 1, 0], [], []>} : vector<16x8xbf16>, vector<16x8xbf16>, vector<16x16xf32> -> vector<16x16xf32>
    %cst_21 = arith.constant dense<0xFF800000> : vector<16xf32>
    %22 = vector.multi_reduction <maximumf>, %21, %cst_21 [1] : vector<16x16xf32> to vector<16xf32>
    %23 = vector.shape_cast %22 : vector<16xf32> to vector<16x1xf32>
    %24 = vector.broadcast %23 : vector<16x1xf32> to vector<16x16xf32>
    %25 = arith.subf %21, %24 : vector<16x16xf32>
    %26 = math.exp %25 : vector<16x16xf32>
    %27 = arith.mulf %26, %13 : vector<16x16xf32>
    %cst_22 = arith.constant dense<0.000000e+00> : vector<16xf32>
    %28 = vector.multi_reduction <add>, %27, %cst_22 [1] : vector<16x16xf32> to vector<16xf32>
    %29 = vector.shape_cast %28 : vector<16xf32> to vector<16x1xf32>
    %30 = tpu.reciprocal %29 {approx = true} : vector<16x1xf32> -> vector<16x1xf32>
    %31 = vector.broadcast %30 : vector<16x1xf32> to vector<16x16xf32>
    %32 = arith.mulf %27, %31 : vector<16x16xf32>
    %33 = arith.truncf %32 : vector<16x16xf32> to vector<16x16xbf16>
    %34 = vector.extract_strided_slice %17 {offsets = [0, 64], sizes = [16, 8], strides = [1, 1]} : vector<16x96xbf16> to vector<16x8xbf16>
    %cst_23 = arith.constant dense<0.000000e+00> : vector<16x8xf32>
    %35 = tpu.matmul %33, %34, %cst_23 {dimension_numbers = #tpu.dot_dimension_numbers<[1], [0], [0], [1], [0, 0, 1, 1], [], []>} : vector<16x16xbf16>, vector<16x8xbf16>, vector<16x8xf32> -> vector<16x8xf32>
    %36 = arith.truncf %35 : vector<16x8xf32> to vector<16x8xbf16>
    %37 = vector.extract_strided_slice %2 {offsets = [0, 0], sizes = [8, 32], strides = [1, 1]} : vector<32x32xbf16> to vector<8x32xbf16>
    %cst_24 = arith.constant dense<0.000000e+00> : vector<16x32xf32>
    %38 = tpu.matmul %36, %37, %cst_24 {dimension_numbers = #tpu.dot_dimension_numbers<[1], [0], [0], [1], [0, 0, 1, 1], [], []>} : vector<16x8xbf16>, vector<8x32xbf16>, vector<16x32xf32> -> vector<16x32xf32>
    %39 = arith.addf %18, %38 : vector<16x32xf32>
    %40 = vector.extract_strided_slice %17 {offsets = [0, 8], sizes = [16, 8], strides = [1, 1]} : vector<16x96xbf16> to vector<16x8xbf16>
    %41 = vector.extract_strided_slice %17 {offsets = [0, 40], sizes = [16, 8], strides = [1, 1]} : vector<16x96xbf16> to vector<16x8xbf16>
    %cst_25 = arith.constant dense<0.000000e+00> : vector<16x16xf32>
    %42 = tpu.matmul %40, %41, %cst_25 {dimension_numbers = #tpu.dot_dimension_numbers<[1], [1], [0], [0], [0, 0, 1, 0], [], []>} : vector<16x8xbf16>, vector<16x8xbf16>, vector<16x16xf32> -> vector<16x16xf32>
    %cst_26 = arith.constant dense<0xFF800000> : vector<16xf32>
    %43 = vector.multi_reduction <maximumf>, %42, %cst_26 [1] : vector<16x16xf32> to vector<16xf32>
    %44 = vector.shape_cast %43 : vector<16xf32> to vector<16x1xf32>
    %45 = vector.broadcast %44 : vector<16x1xf32> to vector<16x16xf32>
    %46 = arith.subf %42, %45 : vector<16x16xf32>
    %47 = math.exp %46 : vector<16x16xf32>
    %48 = arith.mulf %47, %13 : vector<16x16xf32>
    %cst_27 = arith.constant dense<0.000000e+00> : vector<16xf32>
    %49 = vector.multi_reduction <add>, %48, %cst_27 [1] : vector<16x16xf32> to vector<16xf32>
    %50 = vector.shape_cast %49 : vector<16xf32> to vector<16x1xf32>
    %51 = tpu.reciprocal %50 {approx = true} : vector<16x1xf32> -> vector<16x1xf32>
    %52 = vector.broadcast %51 : vector<16x1xf32> to vector<16x16xf32>
    %53 = arith.mulf %48, %52 : vector<16x16xf32>
    %54 = arith.truncf %53 : vector<16x16xf32> to vector<16x16xbf16>
    %55 = vector.extract_strided_slice %17 {offsets = [0, 72], sizes = [16, 8], strides = [1, 1]} : vector<16x96xbf16> to vector<16x8xbf16>
    %cst_28 = arith.constant dense<0.000000e+00> : vector<16x8xf32>
    %56 = tpu.matmul %54, %55, %cst_28 {dimension_numbers = #tpu.dot_dimension_numbers<[1], [0], [0], [1], [0, 0, 1, 1], [], []>} : vector<16x16xbf16>, vector<16x8xbf16>, vector<16x8xf32> -> vector<16x8xf32>
    %57 = arith.truncf %56 : vector<16x8xf32> to vector<16x8xbf16>
    %58 = vector.extract_strided_slice %2 {offsets = [8, 0], sizes = [8, 32], strides = [1, 1]} : vector<32x32xbf16> to vector<8x32xbf16>
    %cst_29 = arith.constant dense<0.000000e+00> : vector<16x32xf32>
    %59 = tpu.matmul %57, %58, %cst_29 {dimension_numbers = #tpu.dot_dimension_numbers<[1], [0], [0], [1], [0, 0, 1, 1], [], []>} : vector<16x8xbf16>, vector<8x32xbf16>, vector<16x32xf32> -> vector<16x32xf32>
    %60 = arith.addf %39, %59 : vector<16x32xf32>
    %61 = vector.extract_strided_slice %17 {offsets = [0, 16], sizes = [16, 8], strides = [1, 1]} : vector<16x96xbf16> to vector<16x8xbf16>
    %62 = vector.extract_strided_slice %17 {offsets = [0, 48], sizes = [16, 8], strides = [1, 1]} : vector<16x96xbf16> to vector<16x8xbf16>
    %cst_30 = arith.constant dense<0.000000e+00> : vector<16x16xf32>
    %63 = tpu.matmul %61, %62, %cst_30 {dimension_numbers = #tpu.dot_dimension_numbers<[1], [1], [0], [0], [0, 0, 1, 0], [], []>} : vector<16x8xbf16>, vector<16x8xbf16>, vector<16x16xf32> -> vector<16x16xf32>
    %cst_31 = arith.constant dense<0xFF800000> : vector<16xf32>
    %64 = vector.multi_reduction <maximumf>, %63, %cst_31 [1] : vector<16x16xf32> to vector<16xf32>
    %65 = vector.shape_cast %64 : vector<16xf32> to vector<16x1xf32>
    %66 = vector.broadcast %65 : vector<16x1xf32> to vector<16x16xf32>
    %67 = arith.subf %63, %66 : vector<16x16xf32>
    %68 = math.exp %67 : vector<16x16xf32>
    %69 = arith.mulf %68, %13 : vector<16x16xf32>
    %cst_32 = arith.constant dense<0.000000e+00> : vector<16xf32>
    %70 = vector.multi_reduction <add>, %69, %cst_32 [1] : vector<16x16xf32> to vector<16xf32>
    %71 = vector.shape_cast %70 : vector<16xf32> to vector<16x1xf32>
    %72 = tpu.reciprocal %71 {approx = true} : vector<16x1xf32> -> vector<16x1xf32>
    %73 = vector.broadcast %72 : vector<16x1xf32> to vector<16x16xf32>
    %74 = arith.mulf %69, %73 : vector<16x16xf32>
    %75 = arith.truncf %74 : vector<16x16xf32> to vector<16x16xbf16>
    %76 = vector.extract_strided_slice %17 {offsets = [0, 80], sizes = [16, 8], strides = [1, 1]} : vector<16x96xbf16> to vector<16x8xbf16>
    %cst_33 = arith.constant dense<0.000000e+00> : vector<16x8xf32>
    %77 = tpu.matmul %75, %76, %cst_33 {dimension_numbers = #tpu.dot_dimension_numbers<[1], [0], [0], [1], [0, 0, 1, 1], [], []>} : vector<16x16xbf16>, vector<16x8xbf16>, vector<16x8xf32> -> vector<16x8xf32>
    %78 = arith.truncf %77 : vector<16x8xf32> to vector<16x8xbf16>
    %79 = vector.extract_strided_slice %2 {offsets = [16, 0], sizes = [8, 32], strides = [1, 1]} : vector<32x32xbf16> to vector<8x32xbf16>
    %cst_34 = arith.constant dense<0.000000e+00> : vector<16x32xf32>
    %80 = tpu.matmul %78, %79, %cst_34 {dimension_numbers = #tpu.dot_dimension_numbers<[1], [0], [0], [1], [0, 0, 1, 1], [], []>} : vector<16x8xbf16>, vector<8x32xbf16>, vector<16x32xf32> -> vector<16x32xf32>
    %81 = arith.addf %60, %80 : vector<16x32xf32>
    %82 = vector.extract_strided_slice %17 {offsets = [0, 24], sizes = [16, 8], strides = [1, 1]} : vector<16x96xbf16> to vector<16x8xbf16>
    %83 = vector.extract_strided_slice %17 {offsets = [0, 56], sizes = [16, 8], strides = [1, 1]} : vector<16x96xbf16> to vector<16x8xbf16>
    %cst_35 = arith.constant dense<0.000000e+00> : vector<16x16xf32>
    %84 = tpu.matmul %82, %83, %cst_35 {dimension_numbers = #tpu.dot_dimension_numbers<[1], [1], [0], [0], [0, 0, 1, 0], [], []>} : vector<16x8xbf16>, vector<16x8xbf16>, vector<16x16xf32> -> vector<16x16xf32>
    %cst_36 = arith.constant dense<0xFF800000> : vector<16xf32>
    %85 = vector.multi_reduction <maximumf>, %84, %cst_36 [1] : vector<16x16xf32> to vector<16xf32>
    %86 = vector.shape_cast %85 : vector<16xf32> to vector<16x1xf32>
    %87 = vector.broadcast %86 : vector<16x1xf32> to vector<16x16xf32>
    %88 = arith.subf %84, %87 : vector<16x16xf32>
    %89 = math.exp %88 : vector<16x16xf32>
    %90 = arith.mulf %89, %13 : vector<16x16xf32>
    %cst_37 = arith.constant dense<0.000000e+00> : vector<16xf32>
    %91 = vector.multi_reduction <add>, %90, %cst_37 [1] : vector<16x16xf32> to vector<16xf32>
    %92 = vector.shape_cast %91 : vector<16xf32> to vector<16x1xf32>
    %93 = tpu.reciprocal %92 {approx = true} : vector<16x1xf32> -> vector<16x1xf32>
    %94 = vector.broadcast %93 : vector<16x1xf32> to vector<16x16xf32>
    %95 = arith.mulf %90, %94 : vector<16x16xf32>
    %96 = arith.truncf %95 : vector<16x16xf32> to vector<16x16xbf16>
    %97 = vector.extract_strided_slice %17 {offsets = [0, 88], sizes = [16, 8], strides = [1, 1]} : vector<16x96xbf16> to vector<16x8xbf16>
    %cst_38 = arith.constant dense<0.000000e+00> : vector<16x8xf32>
    %98 = tpu.matmul %96, %97, %cst_38 {dimension_numbers = #tpu.dot_dimension_numbers<[1], [0], [0], [1], [0, 0, 1, 1], [], []>} : vector<16x16xbf16>, vector<16x8xbf16>, vector<16x8xf32> -> vector<16x8xf32>
    %99 = arith.truncf %98 : vector<16x8xf32> to vector<16x8xbf16>
    %100 = vector.extract_strided_slice %2 {offsets = [24, 0], sizes = [8, 32], strides = [1, 1]} : vector<32x32xbf16> to vector<8x32xbf16>
    %cst_39 = arith.constant dense<0.000000e+00> : vector<16x32xf32>
    %101 = tpu.matmul %99, %100, %cst_39 {dimension_numbers = #tpu.dot_dimension_numbers<[1], [0], [0], [1], [0, 0, 1, 1], [], []>} : vector<16x8xbf16>, vector<8x32xbf16>, vector<16x32xf32> -> vector<16x32xf32>
    %102 = arith.addf %81, %101 : vector<16x32xf32>
    %103 = arith.addf %102, %6 : vector<16x32xf32>
    %104 = arith.addf %0, %103 : vector<16x32xf32>
    %cst_40 = arith.constant dense<0.000000e+00> : vector<16xf32>
    %105 = vector.multi_reduction <add>, %104, %cst_40 [1] : vector<16x32xf32> to vector<16xf32>
    %106 = vector.shape_cast %105 : vector<16xf32> to vector<16x1xf32>
    %cst_41 = arith.constant 3.200000e+01 : f32
    %107 = vector.broadcast %cst_41 : f32 to vector<16x1xf32>
    %108 = arith.divf %106, %107 : vector<16x1xf32>
    %109 = vector.broadcast %108 : vector<16x1xf32> to vector<16x32xf32>
    %110 = arith.subf %104, %109 : vector<16x32xf32>
    %111 = arith.mulf %110, %110 : vector<16x32xf32>
    %cst_42 = arith.constant dense<0.000000e+00> : vector<16xf32>
    %112 = vector.multi_reduction <add>, %111, %cst_42 [1] : vector<16x32xf32> to vector<16xf32>
    %113 = vector.shape_cast %112 : vector<16xf32> to vector<16x1xf32>
    %cst_43 = arith.constant 3.200000e+01 : f32
    %114 = vector.broadcast %cst_43 : f32 to vector<16x1xf32>
    %115 = arith.divf %113, %114 : vector<16x1xf32>
    %cst_44 = arith.constant 9.99999974E-6 : f32
    %116 = vector.broadcast %cst_44 : f32 to vector<16x1xf32>
    %117 = arith.addf %115, %116 : vector<16x1xf32>
    %118 = math.rsqrt %117 : vector<16x1xf32>
    %119 = vector.broadcast %118 : vector<16x1xf32> to vector<16x32xf32>
    %120 = arith.mulf %110, %119 : vector<16x32xf32>
    %121 = arith.mulf %120, %9 : vector<16x32xf32>
    %122 = arith.addf %121, %10 : vector<16x32xf32>
    %123 = arith.truncf %122 : vector<16x32xf32> to vector<16x32xbf16>
    %cst_45 = arith.constant dense<0.000000e+00> : vector<16x32xf32>
    %124 = tpu.matmul %123, %3, %cst_45 {dimension_numbers = #tpu.dot_dimension_numbers<[1], [0], [0], [1], [0, 0, 1, 1], [], []>} : vector<16x32xbf16>, vector<32x32xbf16>, vector<16x32xf32> -> vector<16x32xf32>
    %125 = arith.addf %124, %7 : vector<16x32xf32>
    %cst_46 = arith.constant 0.000000e+00 : f32
    %126 = vector.broadcast %cst_46 : f32 to vector<16x32xf32>
    %127 = arith.maximumf %125, %126 : vector<16x32xf32>
    %128 = arith.truncf %127 : vector<16x32xf32> to vector<16x32xbf16>
    %cst_47 = arith.constant dense<0.000000e+00> : vector<16x32xf32>
    %129 = tpu.matmul %128, %4, %cst_47 {dimension_numbers = #tpu.dot_dimension_numbers<[1], [0], [0], [1], [0, 0, 1, 1], [], []>} : vector<16x32xbf16>, vector<32x32xbf16>, vector<16x32xf32> -> vector<16x32xf32>
    %130 = arith.addf %129, %8 : vector<16x32xf32>
    %131 = arith.addf %122, %130 : vector<16x32xf32>
    %cst_48 = arith.constant dense<0.000000e+00> : vector<16xf32>
    %132 = vector.multi_reduction <add>, %131, %cst_48 [1] : vector<16x32xf32> to vector<16xf32>
    %133 = vector.shape_cast %132 : vector<16xf32> to vector<16x1xf32>
    %cst_49 = arith.constant 3.200000e+01 : f32
    %134 = vector.broadcast %cst_49 : f32 to vector<16x1xf32>
    %135 = arith.divf %133, %134 : vector<16x1xf32>
    %136 = vector.broadcast %135 : vector<16x1xf32> to vector<16x32xf32>
    %137 = arith.subf %131, %136 : vector<16x32xf32>
    %138 = arith.mulf %137, %137 : vector<16x32xf32>
    %cst_50 = arith.constant dense<0.000000e+00> : vector<16xf32>
    %139 = vector.multi_reduction <add>, %138, %cst_50 [1] : vector<16x32xf32> to vector<16xf32>
    %140 = vector.shape_cast %139 : vector<16xf32> to vector<16x1xf32>
    %cst_51 = arith.constant 3.200000e+01 : f32
    %141 = vector.broadcast %cst_51 : f32 to vector<16x1xf32>
    %142 = arith.divf %140, %141 : vector<16x1xf32>
    %cst_52 = arith.constant 9.99999974E-6 : f32
    %143 = vector.broadcast %cst_52 : f32 to vector<16x1xf32>
    %144 = arith.addf %142, %143 : vector<16x1xf32>
    %145 = math.rsqrt %144 : vector<16x1xf32>
    %146 = vector.broadcast %145 : vector<16x1xf32> to vector<16x32xf32>
    %147 = arith.mulf %137, %146 : vector<16x32xf32>
    %148 = arith.mulf %147, %11 : vector<16x32xf32>
    %149 = arith.addf %148, %12 : vector<16x32xf32>
    %c0_53 = arith.constant 0 : index
    %c0_54 = arith.constant 0 : index
    %150 = vector.load %arg5[%c0_53, %c0_54] : memref<16x32xf32, #tpu.memory_space<vmem>>, vector<16x32xf32>
    tpu.vector_store %arg5[%c0_53, %c0_54], %149 {strides = array<i32>} : memref<16x32xf32, #tpu.memory_space<vmem>>, vector<16x32xf32>,
    return
  }
  func.func @transform_0(%arg0: i32) -> (i32, i32) {
    %c0_i32 = arith.constant 0 : i32
    %c0_i32_0 = arith.constant 0 : i32
    return %arg0, %c0_i32 : i32, i32
  }
  func.func @transform_1(%arg0: i32) -> (i32, i32) {
    %c0_i32 = arith.constant 0 : i32
    %c0_i32_0 = arith.constant 0 : i32
    %c0_i32_1 = arith.constant 0 : i32
    return %c0_i32, %c0_i32_0 : i32, i32
  }
  func.func @transform_2(%arg0: i32) -> (i32, i32) {
    %c0_i32 = arith.constant 0 : i32
    %c0_i32_0 = arith.constant 0 : i32
    %c0_i32_1 = arith.constant 0 : i32
    return %c0_i32, %c0_i32_0 : i32, i32
  }
  func.func @transform_3(%arg0: i32) -> (i32, i32) {
    %c0_i32 = arith.constant 0 : i32
    %c0_i32_0 = arith.constant 0 : i32
    %c0_i32_1 = arith.constant 0 : i32
    return %c0_i32, %c0_i32_0 : i32, i32
  }
  func.func @transform_4(%arg0: i32) -> (i32, i32) {
    %c0_i32 = arith.constant 0 : i32
    %c0_i32_0 = arith.constant 0 : i32
    return %arg0, %c0_i32 : i32, i32
  }
}

</mosaic_0001>

<llo_original>
// kernel: tpu_custom_call.1
$region0: #{tpu_custom_call.1}
  #allocation0 [shape = 'u32[]', space=smem, size = 0x4, offset = 0x4, fixed_abs, tag = 'smem constant byte address 0x4 - core index']
  #allocation1 [shape = 'u32[144,128]{1,0:T(1,128)}', space=vmem, size = 0x12000, scoped, tag = 'internal scratch']
  %s0 = inlined_call_operand.vmem [shape: f32[16,32], index: 0, kind: input, shape index: {}]
  %s1 = inlined_call_operand.vmem [shape: bf16[32,96], index: 1, kind: input, shape index: {}]
  %s2 = inlined_call_operand.vmem [shape: bf16[96,32], index: 2, kind: input, shape index: {}]
  %s3 = inlined_call_operand.hbm [shape: f32[144,96], index: 3, kind: input, shape index: {}]
  %s4 = inlined_call_operand.hbm [shape: f32[16,32], index: 4, kind: output, shape index: {}]
  %s5 = sld [smem:[#allocation0]]
  $region30: #{tpu_custom_call.1} parent=0
    _
  %s7 = ssub.s32 1, %s5
  %s8 = scalar_select 0, %s7, %s5
  $region1: #{tpu_custom_call.1} parent=0
    #allocation2 [shape = 'u8[73728]{0}', space=vmem, size = 0x12000, scoped, tag = 'input window, operand 3, single buffered']
    #allocation3 [shape = 's32[1]{0}', space=sflag, size = 0x4, scoped, tag = 'scoped memory for tpu_custom_call.1']
    #allocation4 [shape = 's32[1]{0}', space=sflag, size = 0x4, scoped, tag = 'scoped memory for tpu_custom_call.1']
    #allocation5 [shape = 'u8[8192]{0}', space=vmem, size = 0x2000, scoped, tag = 'output window, operand 0, single buffered']
    %9 = vsyncpa [#allocation3], 0
    %10 = vsyncpa [#allocation4], 0
    // Predicated region
    $region2: #{tpu_custom_call.1} parent=1 // pred_check
      _
    $region3: #{tpu_custom_call.1} parent=1 // pred_check_branch
      %12 = sbr.rel (0) target = $region5
    $region4: #{tpu_custom_call.1} parent=1 // pred_region
      _
    $region5: #{tpu_custom_call.1} parent=1 // pred_fallthru
      _
    // Predicated region
    $region6: #{tpu_custom_call.1} parent=1 // pred_check
      _
    $region7: #{tpu_custom_call.1} parent=1 // pred_check_branch
      %14 = sbr.rel (0) target = $region9
    $region8: #{tpu_custom_call.1} parent=1 // pred_region
      _
    $region9: #{tpu_custom_call.1} parent=1 // pred_fallthru
      _
    // Predicated region
    $region10: #{tpu_custom_call.1} parent=1 // pred_check
      _
    $region11: #{tpu_custom_call.1} parent=1 // pred_check_branch
      %16 = sbr.rel (0) target = $region13
    $region12: #{tpu_custom_call.1} parent=1 // pred_region
      _
    $region13: #{tpu_custom_call.1} parent=1 // pred_fallthru
      _
    // Predicated region
    $region14: #{tpu_custom_call.1} parent=1 // pred_check
      _
    $region15: #{tpu_custom_call.1} parent=1 // pred_check_branch
      %18 = sbr.rel (0) target = $region17
    $region16: #{tpu_custom_call.1} parent=1 // pred_region
      %s20 = ssub.s32 2304, 2304
      %21 = vsyncadd [#allocation3], %s20
      %s22 = sshll.u32 [#allocation2], 4
      %s23 = int_to_ptr.vmem [resolvable:$true] %s22
      %28 = dma.hbm_to_vmem [thread:$0]  %s3, 2304, %s23, [#allocation3], 128, 128, 8
    $region17: #{tpu_custom_call.1} parent=1 // pred_fallthru
      _
    // Predicated region
    $region18: #{tpu_custom_call.1} parent=1 // pred_check
      _
    $region19: #{tpu_custom_call.1} parent=1 // pred_check_branch
      %30 = sbr.rel (0) target = $region21
    $region20: #{tpu_custom_call.1} parent=1 // pred_region
      %31 = dma.done [#allocation3], 2304
    $region21: #{tpu_custom_call.1} parent=1 // pred_fallthru
      _
    %v33 = vld [vmem:[%s0] sm:$0xff]
    %v34 = vld [vmem:[%s0 + $0x8] sm:$0xff]
    %v35 = vld [vmem:[%s1] sm:$0xf]
    %v36 = vld [vmem:[%s1 + $0x4] sm:$0xf]
    %v37 = vld [vmem:[%s1 + $0x8] sm:$0xf]
    %v38 = vld [vmem:[%s1 + $0xc] sm:$0xf]
    %v39 = vld [vmem:[%s2] sm:$0xf]
    %v40 = vld [vmem:[%s2 + $0x4] sm:$0xf]
    %v41 = vld [vmem:[%s2 + $0x8] sm:$0xf]
    %v42 = vld [vmem:[%s2 + $0xc] sm:$0xf]
    %v43 = vld [vmem:[%s2 + $0x10] sm:$0xf]
    %v44 = vld [vmem:[%s2 + $0x14] sm:$0xf]
    %v45 = vld [vmem:[%s2 + $0x18] sm:$0xf]
    %v46 = vld [vmem:[%s2 + $0x1c] sm:$0xf]
    %v47 = vld [vmem:[%s2 + $0x20] sm:$0xf]
    %v48 = vld [vmem:[%s2 + $0x24] sm:$0xf]
    %v49 = vld [vmem:[%s2 + $0x28] sm:$0xf]
    %v50 = vld [vmem:[%s2 + $0x2c] sm:$0xf]
    %v51 = vld [vmem:[#allocation2] sm:$0xff]
    %v52 = vld [vmem:[#allocation2 + $0x8] sm:$0xff]
    %v53 = vld [vmem:[#allocation2 + $0x10] sm:$0xff]
    %v54 = vld [vmem:[#allocation2 + $0x18] sm:$0xff]
    %v55 = vld [vmem:[#allocation2 + $0x20] sm:$0xff]
    %v56 = vld [vmem:[#allocation2 + $0x28] sm:$0xff]
    %v57 = vld [vmem:[#allocation2 + $0x30] sm:$0xff]
    %v58 = vld [vmem:[#allocation2 + $0x38] sm:$0xff]
    %v59 = vld [vmem:[#allocation2 + $0x40] sm:$0xff]
    %v60 = vld [vmem:[#allocation2 + $0x48] sm:$0xff]
    %v61 = vld [vmem:[#allocation2 + $0x50] sm:$0xff]
    %v62 = vld [vmem:[#allocation2 + $0x58] sm:$0xff]
    %v63 = vld [vmem:[#allocation2 + $0x60] sm:$0xff]
    %v64 = vld [vmem:[#allocation2 + $0x68] sm:$0xff]
    %v65 = vld [vmem:[#allocation2 + $0x70] sm:$0xff]
    %v66 = vld [vmem:[#allocation2 + $0x78] sm:$0xff]
    %v67 = vld [vmem:[#allocation2 + $0x80] sm:$0xff]
    %v68 = vld [vmem:[#allocation2 + $0x88] sm:$0xff]
    %v69 = vpack.c.bf16 %v34, %v33
    %v74 = vunpack.c.l.b16 %v35
    %v75 = vunpack.c.l.b16 %v36
    %v76 = vunpack.c.l.b16 %v37
    %v77 = vunpack.c.l.b16 %v38
    %v78 = vpack.c.b16 %v75, %v74
    %v79 = vpack.c.b16 %v77, %v76
    %vm82 = vcmask 261120
    %v84 = vsel %vm82, %v69, 0
    %86 = vmatprep.subr.bf16.mxu0 0
    %87 = vmatpush1.bf16.msra.mxu0 %v78
    %88 = vmatprep.subr.bf16.mxu0 0
    %89 = vmatpush1.bf16.msra.mxu0 %v79
    %90 = vmatprep.subr.bf16.mxu0 0
    %91 = vmatpush1.bf16.msra.mxu0 0
    %92 = vmatprep.subr.bf16.mxu0 0
    %93 = vmatpush1.bf16.msra.mxu0 0
    %94 = vmatprep.subr.bf16.mxu0 0
    %95 = vmatpush1.bf16.msra.mxu0 0
    %96 = vmatprep.subr.bf16.mxu0 0
    %97 = vmatpush1.bf16.msra.mxu0 0
    %98 = vmatprep.subr.bf16.mxu0 0
    %99 = vmatpush1.bf16.msra.mxu0 0
    %100 = vmatprep.subr.bf16.mxu0 0
    %101 = vmatpush1.bf16.msra.mxu0 0
    %102 = vmatprep.subr.bf16.mxu0 0
    %103 = vmatpush1.bf16.msra.mxu0 0
    %104 = vmatprep.subr.bf16.mxu0 0
    %105 = vmatpush1.bf16.msra.mxu0 0
    %106 = vmatprep.subr.bf16.mxu0 0
    %107 = vmatpush1.bf16.msra.mxu0 0
    %108 = vmatprep.subr.bf16.mxu0 0
    %109 = vmatpush1.bf16.msra.mxu0 0
    %110 = vmatprep.subr.bf16.mxu0 0
    %111 = vmatpush1.bf16.msra.mxu0 0
    %112 = vmatprep.subr.bf16.mxu0 0
    %113 = vmatpush1.bf16.msra.mxu0 0
    %114 = vmatprep.subr.bf16.mxu0 0
    %115 = vmatpush1.bf16.msra.mxu0 0
    %116 = vmatprep.subr.bf16.mxu0 0
    %117 = vmatpush1.bf16.msra.mxu0 0
    %118 = vmatprep.mubr.bf16.mxu0 0
    %119 = vmatmul.mubr.bf16.gmra.mrb[0].mxu0 %v84
    %v120 = vpop.f32.mrb[0].mxu0
    %v121 = vadd.f32 %v51, %v120
    %v122 = vpop.f32.mrb[0].mxu0
    %v123 = vpop.f32.mrb[0].mxu0
    %v124 = vadd.f32 %v52, %v123
    %v125 = vpop.f32.mrb[0].mxu0
    %126 = vdwg.mxu0
    %v127 = vpack.c.bf16 %v124, %v121
    %129 = vrot.lane.b32.xlu0 %v127, 96
    %v130 = vpop.permute.xlu0 %129
    %vm131 = vcmask 64512
    %v133 = vsel %vm131, %v127, 0
    %v136 = vsel %vm131, %v130, 0
    %138 = vmatprep.subr.bf16.mxu0 0
    %139 = vmatpush1.bf16.xpose.msra.mxu0 %v136
    %140 = vmatprep.subr.bf16.mxu0 0
    %141 = vmatpush1.bf16.xpose.msra.mxu0 0
    %142 = vmatprep.subr.bf16.mxu0 0
    %143 = vmatpush1.bf16.xpose.msra.mxu0 0
    %144 = vmatprep.subr.bf16.mxu0 0
    %145 = vmatpush1.bf16.xpose.msra.mxu0 0
    %146 = vmatprep.subr.bf16.mxu0 0
    %147 = vmatpush1.bf16.xpose.msra.mxu0 0
    %148 = vmatprep.subr.bf16.mxu0 0
    %149 = vmatpush1.bf16.xpose.msra.mxu0 0
    %150 = vmatprep.subr.bf16.mxu0 0
    %151 = vmatpush1.bf16.xpose.msra.mxu0 0
    %152 = vmatprep.subr.bf16.mxu0 0
    %153 = vmatpush1.bf16.xpose.msra.mxu0 0
    %154 = vmatprep.subr.bf16.mxu0 0
    %155 = vmatpush1.bf16.xpose.msra.mxu0 0
    %156 = vmatprep.subr.bf16.mxu0 0
    %157 = vmatpush1.bf16.xpose.msra.mxu0 0
    %158 = vmatprep.subr.bf16.mxu0 0
    %159 = vmatpush1.bf16.xpose.msra.mxu0 0
    %160 = vmatprep.subr.bf16.mxu0 0
    %161 = vmatpush1.bf16.xpose.msra.mxu0 0
    %162 = vmatprep.subr.bf16.mxu0 0
    %163 = vmatpush1.bf16.xpose.msra.mxu0 0
    %164 = vmatprep.subr.bf16.mxu0 0
    %165 = vmatpush1.bf16.xpose.msra.mxu0 0
    %166 = vmatprep.subr.bf16.mxu0 0
    %167 = vmatpush1.bf16.xpose.msra.mxu0 0
    %168 = vmatprep.subr.bf16.mxu0 0
    %169 = vmatpush1.bf16.xpose.msra.mxu0 0
    %170 = vmatprep.mubr.bf16.mxu0 0
    %171 = vmatmul.mubr.bf16.gmra.mrb[0].mxu0 %v133
    %v172 = vpop.f32.mrb[0].mxu0
    %v173 = vadd.f32 0.0, %v172
    %v174 = vpop.f32.mrb[0].mxu0
    %v175 = vpop.f32.mrb[0].mxu0
    %v176 = vadd.f32 0.0, %v175
    %v177 = vpop.f32.mrb[0].mxu0
    %178 = vdwg.mxu0
    %vm179 = vcmask 130048
    %v180 = vsel %vm179, %v173, -inf
    %181 = vmax.xlane.f32.xlu0 %v180
    %v182 = vpop.xlane.xlu0 %181
    %v183 = vsel %vm179, %v176, -inf
    %184 = vmax.xlane.f32.xlu0 %v183
    %v185 = vpop.xlane.xlu0 %184
    %v186 = vsub.f32 %v173, %v182
    %v187 = vsub.f32 %v176, %v185
    %v188 = vmul.f32 %v186, 1.442695
    %v189 = vpow.pop %v188
    %v190 = vmul.f32 %v187, 1.442695
    %v191 = vpow.pop %v190
    %v192 = vmul.f32 %v189, %v67
    %v193 = vmul.f32 %v191, %v68
    %v194 = vsel %vm179, %v192, 0.0
    %195 = vadd.xlane.f32.xlu0 %v194
    %v196 = vpop.xlane.xlu0 %195
    %v197 = vsel %vm179, %v193, 0.0
    %198 = vadd.xlane.f32.xlu0 %v197
    %v199 = vpop.xlane.xlu0 %198
    %v200 = vrcp.pop %v196
    %v201 = vrcp.pop %v199
    %v202 = vmul.f32 %v192, %v200
    %v203 = vmul.f32 %v193, %v201
    %v204 = vpack.c.bf16 %v203, %v202
    %205 = vrot.lane.b32.xlu0 %v127, 64
    %v206 = vpop.permute.xlu0 %205
    %v209 = vsel %vm179, %v204, 0
    %211 = vmatprep.subr.bf16.mxu0 0
    %212 = vmatpush1.bf16.msra.mxu0 %v206
    %213 = vmatprep.subr.bf16.mxu0 0
    %214 = vmatpush1.bf16.msra.mxu0 0
    %215 = vmatprep.subr.bf16.mxu0 0
    %216 = vmatpush1.bf16.msra.mxu0 0
    %217 = vmatprep.subr.bf16.mxu0 0
    %218 = vmatpush1.bf16.msra.mxu0 0
    %219 = vmatprep.subr.bf16.mxu0 0
    %220 = vmatpush1.bf16.msra.mxu0 0
    %221 = vmatprep.subr.bf16.mxu0 0
    %222 = vmatpush1.bf16.msra.mxu0 0
    %223 = vmatprep.subr.bf16.mxu0 0
    %224 = vmatpush1.bf16.msra.mxu0 0
    %225 = vmatprep.subr.bf16.mxu0 0
    %226 = vmatpush1.bf16.msra.mxu0 0
    %227 = vmatprep.subr.bf16.mxu0 0
    %228 = vmatpush1.bf16.msra.mxu0 0
    %229 = vmatprep.subr.bf16.mxu0 0
    %230 = vmatpush1.bf16.msra.mxu0 0
    %231 = vmatprep.subr.bf16.mxu0 0
    %232 = vmatpush1.bf16.msra.mxu0 0
    %233 = vmatprep.subr.bf16.mxu0 0
    %234 = vmatpush1.bf16.msra.mxu0 0
    %235 = vmatprep.subr.bf16.mxu0 0
    %236 = vmatpush1.bf16.msra.mxu0 0
    %237 = vmatprep.subr.bf16.mxu0 0
    %238 = vmatpush1.bf16.msra.mxu0 0
    %239 = vmatprep.subr.bf16.mxu0 0
    %240 = vmatpush1.bf16.msra.mxu0 0
    %241 = vmatprep.subr.bf16.mxu0 0
    %242 = vmatpush1.bf16.msra.mxu0 0
    %243 = vmatprep.mubr.bf16.mxu0 0
    %244 = vmatmul.mubr.bf16.gmra.mrb[0].mxu0 %v209
    %v245 = vpop.f32.mrb[0].mxu0
    %v246 = vadd.f32 0.0, %v245
    %v247 = vpop.f32.mrb[0].mxu0
    %v248 = vpop.f32.mrb[0].mxu0
    %v249 = vadd.f32 0.0, %v248
    %v250 = vpop.f32.mrb[0].mxu0
    %251 = vdwg.mxu0
    %v252 = vpack.c.bf16 %v249, %v246
    %253 = vrot.lane.b32.xlu0 %v127, 120
    %v254 = vpop.permute.xlu0 %253
    %255 = vrot.lane.b32.xlu0 %v127, 88
    %v256 = vpop.permute.xlu0 %255
    %v258 = vsel %vm131, %v254, 0
    %v261 = vsel %vm131, %v256, 0
    %263 = vmatprep.subr.bf16.mxu0 0
    %264 = vmatpush1.bf16.xpose.msra.mxu0 %v261
    %265 = vmatprep.subr.bf16.mxu0 0
    %266 = vmatpush1.bf16.xpose.msra.mxu0 0
    %267 = vmatprep.subr.bf16.mxu0 0
    %268 = vmatpush1.bf16.xpose.msra.mxu0 0
    %269 = vmatprep.subr.bf16.mxu0 0
    %270 = vmatpush1.bf16.xpose.msra.mxu0 0
    %271 = vmatprep.subr.bf16.mxu0 0
    %272 = vmatpush1.bf16.xpose.msra.mxu0 0
    %273 = vmatprep.subr.bf16.mxu0 0
    %274 = vmatpush1.bf16.xpose.msra.mxu0 0
    %275 = vmatprep.subr.bf16.mxu0 0
    %276 = vmatpush1.bf16.xpose.msra.mxu0 0
    %277 = vmatprep.subr.bf16.mxu0 0
    %278 = vmatpush1.bf16.xpose.msra.mxu0 0
    %279 = vmatprep.subr.bf16.mxu0 0
    %280 = vmatpush1.bf16.xpose.msra.mxu0 0
    %281 = vmatprep.subr.bf16.mxu0 0
    %282 = vmatpush1.bf16.xpose.msra.mxu0 0
    %283 = vmatprep.subr.bf16.mxu0 0
    %284 = vmatpush1.bf16.xpose.msra.mxu0 0
    %285 = vmatprep.subr.bf16.mxu0 0
    %286 = vmatpush1.bf16.xpose.msra.mxu0 0
    %287 = vmatprep.subr.bf16.mxu0 0
    %288 = vmatpush1.bf16.xpose.msra.mxu0 0
    %289 = vmatprep.subr.bf16.mxu0 0
    %290 = vmatpush1.bf16.xpose.msra.mxu0 0
    %291 = vmatprep.subr.bf16.mxu0 0
    %292 = vmatpush1.bf16.xpose.msra.mxu0 0
    %293 = vmatprep.subr.bf16.mxu0 0
    %294 = vmatpush1.bf16.xpose.msra.mxu0 0
    %295 = vmatprep.mubr.bf16.mxu0 0
    %296 = vmatmul.mubr.bf16.gmra.mrb[0].mxu0 %v258
    %v297 = vpop.f32.mrb[0].mxu0
    %v298 = vadd.f32 0.0, %v297
    %v299 = vpop.f32.mrb[0].mxu0
    %v300 = vpop.f32.mrb[0].mxu0
    %v301 = vadd.f32 0.0, %v300
    %v302 = vpop.f32.mrb[0].mxu0
    %303 = vdwg.mxu0
    %v304 = vsel %vm179, %v298, -inf
    %305 = vmax.xlane.f32.xlu0 %v304
    %v306 = vpop.xlane.xlu0 %305
    %v307 = vsel %vm179, %v301, -inf
    %308 = vmax.xlane.f32.xlu0 %v307
    %v309 = vpop.xlane.xlu0 %308
    %v310 = vsub.f32 %v298, %v306
    %v311 = vsub.f32 %v301, %v309
    %v312 = vmul.f32 %v310, 1.442695
    %v313 = vpow.pop %v312
    %v314 = vmul.f32 %v311, 1.442695
    %v315 = vpow.pop %v314
    %v316 = vmul.f32 %v313, %v67
    %v317 = vmul.f32 %v315, %v68
    %v318 = vsel %vm179, %v316, 0.0
    %319 = vadd.xlane.f32.xlu0 %v318
    %v320 = vpop.xlane.xlu0 %319
    %v321 = vsel %vm179, %v317, 0.0
    %322 = vadd.xlane.f32.xlu0 %v321
    %v323 = vpop.xlane.xlu0 %322
    %v324 = vrcp.pop %v320
    %v325 = vrcp.pop %v323
    %v326 = vmul.f32 %v316, %v324
    %v327 = vmul.f32 %v317, %v325
    %v328 = vpack.c.bf16 %v327, %v326
    %329 = vrot.lane.b32.xlu0 %v127, 56
    %v330 = vpop.permute.xlu0 %329
    %v333 = vsel %vm179, %v328, 0
    %335 = vmatprep.subr.bf16.mxu0 0
    %336 = vmatpush1.bf16.msra.mxu0 %v330
    %337 = vmatprep.subr.bf16.mxu0 0
    %338 = vmatpush1.bf16.msra.mxu0 0
    %339 = vmatprep.subr.bf16.mxu0 0
    %340 = vmatpush1.bf16.msra.mxu0 0
    %341 = vmatprep.subr.bf16.mxu0 0
    %342 = vmatpush1.bf16.msra.mxu0 0
    %343 = vmatprep.subr.bf16.mxu0 0
    %344 = vmatpush1.bf16.msra.mxu0 0
    %345 = vmatprep.subr.bf16.mxu0 0
    %346 = vmatpush1.bf16.msra.mxu0 0
    %347 = vmatprep.subr.bf16.mxu0 0
    %348 = vmatpush1.bf16.msra.mxu0 0
    %349 = vmatprep.subr.bf16.mxu0 0
    %350 = vmatpush1.bf16.msra.mxu0 0
    %351 = vmatprep.subr.bf16.mxu0 0
    %352 = vmatpush1.bf16.msra.mxu0 0
    %353 = vmatprep.subr.bf16.mxu0 0
    %354 = vmatpush1.bf16.msra.mxu0 0
    %355 = vmatprep.subr.bf16.mxu0 0
    %356 = vmatpush1.bf16.msra.mxu0 0
    %357 = vmatprep.subr.bf16.mxu0 0
    %358 = vmatpush1.bf16.msra.mxu0 0
    %359 = vmatprep.subr.bf16.mxu0 0
    %360 = vmatpush1.bf16.msra.mxu0 0
    %361 = vmatprep.subr.bf16.mxu0 0
    %362 = vmatpush1.bf16.msra.mxu0 0
    %363 = vmatprep.subr.bf16.mxu0 0
    %364 = vmatpush1.bf16.msra.mxu0 0
    %365 = vmatprep.subr.bf16.mxu0 0
    %366 = vmatpush1.bf16.msra.mxu0 0
    %367 = vmatprep.mubr.bf16.mxu0 0
    %368 = vmatmul.mubr.bf16.gmra.mrb[0].mxu0 %v333
    %v369 = vpop.f32.mrb[0].mxu0
    %v370 = vadd.f32 0.0, %v369
    %v371 = vpop.f32.mrb[0].mxu0
    %v372 = vpop.f32.mrb[0].mxu0
    %v373 = vadd.f32 0.0, %v372
    %v374 = vpop.f32.mrb[0].mxu0
    %375 = vdwg.mxu0
    %v376 = vpack.c.bf16 %v373, %v370
    %v378 = vsel %vm131, %v376, 0
    %vm380 = vcmask 1043456
    %v382 = vsel %vm380, %v40, 0
    %384 = vmatprep.subr.bf16.mxu0 0
    %385 = vmatpush1.bf16.msra.mxu0 %v382
    %386 = vmatprep.subr.bf16.mxu0 0
    %387 = vmatpush1.bf16.msra.mxu0 0
    %388 = vmatprep.subr.bf16.mxu0 0
    %389 = vmatpush1.bf16.msra.mxu0 0
    %390 = vmatprep.subr.bf16.mxu0 0
    %391 = vmatpush1.bf16.msra.mxu0 0
    %392 = vmatprep.subr.bf16.mxu0 0
    %393 = vmatpush1.bf16.msra.mxu0 0
    %394 = vmatprep.subr.bf16.mxu0 0
    %395 = vmatpush1.bf16.msra.mxu0 0
    %396 = vmatprep.subr.bf16.mxu0 0
    %397 = vmatpush1.bf16.msra.mxu0 0
    %398 = vmatprep.subr.bf16.mxu0 0
    %399 = vmatpush1.bf16.msra.mxu0 0
    %400 = vmatprep.subr.bf16.mxu0 0
    %401 = vmatpush1.bf16.msra.mxu0 0
    %402 = vmatprep.subr.bf16.mxu0 0
    %403 = vmatpush1.bf16.msra.mxu0 0
    %404 = vmatprep.subr.bf16.mxu0 0
    %405 = vmatpush1.bf16.msra.mxu0 0
    %406 = vmatprep.subr.bf16.mxu0 0
    %407 = vmatpush1.bf16.msra.mxu0 0
    %408 = vmatprep.subr.bf16.mxu0 0
    %409 = vmatpush1.bf16.msra.mxu0 0
    %410 = vmatprep.subr.bf16.mxu0 0
    %411 = vmatpush1.bf16.msra.mxu0 0
    %412 = vmatprep.subr.bf16.mxu0 0
    %413 = vmatpush1.bf16.msra.mxu0 0
    %414 = vmatprep.subr.bf16.mxu0 0
    %415 = vmatpush1.bf16.msra.mxu0 0
    %416 = vmatprep.mubr.bf16.mxu0 0
    %417 = vmatmul.mubr.bf16.gmra.mrb[0].mxu0 %v378
    %v418 = vpop.f32.mrb[0].mxu0
    %v419 = vadd.f32 0.0, %v418
    %v420 = vpop.f32.mrb[0].mxu0
    %v421 = vpop.f32.mrb[0].mxu0
    %v422 = vadd.f32 0.0, %v421
    %v423 = vpop.f32.mrb[0].mxu0
    %424 = vdwg.mxu0
    %v426 = vsel %vm131, %v252, 0
    %v429 = vsel %vm380, %v39, 0
    %431 = vmatprep.subr.bf16.mxu0 0
    %432 = vmatpush1.bf16.msra.mxu0 %v429
    %433 = vmatprep.subr.bf16.mxu0 0
    %434 = vmatpush1.bf16.msra.mxu0 0
    %435 = vmatprep.subr.bf16.mxu0 0
    %436 = vmatpush1.bf16.msra.mxu0 0
    %437 = vmatprep.subr.bf16.mxu0 0
    %438 = vmatpush1.bf16.msra.mxu0 0
    %439 = vmatprep.subr.bf16.mxu0 0
    %440 = vmatpush1.bf16.msra.mxu0 0
    %441 = vmatprep.subr.bf16.mxu0 0
    %442 = vmatpush1.bf16.msra.mxu0 0
    %443 = vmatprep.subr.bf16.mxu0 0
    %444 = vmatpush1.bf16.msra.mxu0 0
    %445 = vmatprep.subr.bf16.mxu0 0
    %446 = vmatpush1.bf16.msra.mxu0 0
    %447 = vmatprep.subr.bf16.mxu0 0
    %448 = vmatpush1.bf16.msra.mxu0 0
    %449 = vmatprep.subr.bf16.mxu0 0
    %450 = vmatpush1.bf16.msra.mxu0 0
    %451 = vmatprep.subr.bf16.mxu0 0
    %452 = vmatpush1.bf16.msra.mxu0 0
    %453 = vmatprep.subr.bf16.mxu0 0
    %454 = vmatpush1.bf16.msra.mxu0 0
    %455 = vmatprep.subr.bf16.mxu0 0
    %456 = vmatpush1.bf16.msra.mxu0 0
    %457 = vmatprep.subr.bf16.mxu0 0
    %458 = vmatpush1.bf16.msra.mxu0 0
    %459 = vmatprep.subr.bf16.mxu0 0
    %460 = vmatpush1.bf16.msra.mxu0 0
    %461 = vmatprep.subr.bf16.mxu0 0
    %462 = vmatpush1.bf16.msra.mxu0 0
    %463 = vmatprep.mubr.bf16.mxu0 0
    %464 = vmatmul.mubr.bf16.gmra.mrb[0].mxu0 %v426
    %v465 = vpop.f32.mrb[0].mxu0
    %v466 = vadd.f32 %v419, %v465
    %v467 = vpop.f32.mrb[0].mxu0
    %v468 = vpop.f32.mrb[0].mxu0
    %v469 = vadd.f32 %v422, %v468
    %v470 = vpop.f32.mrb[0].mxu0
    %471 = vdwg.mxu0
    %472 = vrot.lane.b32.xlu0 %v127, 112
    %v473 = vpop.permute.xlu0 %472
    %474 = vrot.lane.b32.xlu0 %v127, 80
    %v475 = vpop.permute.xlu0 %474
    %v477 = vsel %vm131, %v473, 0
    %v480 = vsel %vm131, %v475, 0
    %482 = vmatprep.subr.bf16.mxu0 0
    %483 = vmatpush1.bf16.xpose.msra.mxu0 %v480
    %484 = vmatprep.subr.bf16.mxu0 0
    %485 = vmatpush1.bf16.xpose.msra.mxu0 0
    %486 = vmatprep.subr.bf16.mxu0 0
    %487 = vmatpush1.bf16.xpose.msra.mxu0 0
    %488 = vmatprep.subr.bf16.mxu0 0
    %489 = vmatpush1.bf16.xpose.msra.mxu0 0
    %490 = vmatprep.subr.bf16.mxu0 0
    %491 = vmatpush1.bf16.xpose.msra.mxu0 0
    %492 = vmatprep.subr.bf16.mxu0 0
    %493 = vmatpush1.bf16.xpose.msra.mxu0 0
    %494 = vmatprep.subr.bf16.mxu0 0
    %495 = vmatpush1.bf16.xpose.msra.mxu0 0
    %496 = vmatprep.subr.bf16.mxu0 0
    %497 = vmatpush1.bf16.xpose.msra.mxu0 0
    %498 = vmatprep.subr.bf16.mxu0 0
    %499 = vmatpush1.bf16.xpose.msra.mxu0 0
    %500 = vmatprep.subr.bf16.mxu0 0
    %501 = vmatpush1.bf16.xpose.msra.mxu0 0
    %502 = vmatprep.subr.bf16.mxu0 0
    %503 = vmatpush1.bf16.xpose.msra.mxu0 0
    %504 = vmatprep.subr.bf16.mxu0 0
    %505 = vmatpush1.bf16.xpose.msra.mxu0 0
    %506 = vmatprep.subr.bf16.mxu0 0
    %507 = vmatpush1.bf16.xpose.msra.mxu0 0
    %508 = vmatprep.subr.bf16.mxu0 0
    %509 = vmatpush1.bf16.xpose.msra.mxu0 0
    %510 = vmatprep.subr.bf16.mxu0 0
    %511 = vmatpush1.bf16.xpose.msra.mxu0 0
    %512 = vmatprep.subr.bf16.mxu0 0
    %513 = vmatpush1.bf16.xpose.msra.mxu0 0
    %514 = vmatprep.mubr.bf16.mxu0 0
    %515 = vmatmul.mubr.bf16.gmra.mrb[0].mxu0 %v477
    %v516 = vpop.f32.mrb[0].mxu0
    %v517 = vadd.f32 0.0, %v516
    %v518 = vpop.f32.mrb[0].mxu0
    %v519 = vpop.f32.mrb[0].mxu0
    %v520 = vadd.f32 0.0, %v519
    %v521 = vpop.f32.mrb[0].mxu0
    %522 = vdwg.mxu0
    %v523 = vsel %vm179, %v517, -inf
    %524 = vmax.xlane.f32.xlu0 %v523
    %v525 = vpop.xlane.xlu0 %524
    %v526 = vsel %vm179, %v520, -inf
    %527 = vmax.xlane.f32.xlu0 %v526
    %v528 = vpop.xlane.xlu0 %527
    %v529 = vsub.f32 %v517, %v525
    %v530 = vsub.f32 %v520, %v528
    %v531 = vmul.f32 %v529, 1.442695
    %v532 = vpow.pop %v531
    %v533 = vmul.f32 %v530, 1.442695
    %v534 = vpow.pop %v533
    %v535 = vmul.f32 %v532, %v67
    %v536 = vmul.f32 %v534, %v68
    %v537 = vsel %vm179, %v535, 0.0
    %538 = vadd.xlane.f32.xlu0 %v537
    %v539 = vpop.xlane.xlu0 %538
    %v540 = vsel %vm179, %v536, 0.0
    %541 = vadd.xlane.f32.xlu0 %v540
    %v542 = vpop.xlane.xlu0 %541
    %v543 = vrcp.pop %v539
    %v544 = vrcp.pop %v542
    %v545 = vmul.f32 %v535, %v543
    %v546 = vmul.f32 %v536, %v544
    %v547 = vpack.c.bf16 %v546, %v545
    %548 = vrot.lane.b32.xlu0 %v127, 48
    %v549 = vpop.permute.xlu0 %548
    %v552 = vsel %vm179, %v547, 0
    %554 = vmatprep.subr.bf16.mxu0 0
    %555 = vmatpush1.bf16.msra.mxu0 %v549
    %556 = vmatprep.subr.bf16.mxu0 0
    %557 = vmatpush1.bf16.msra.mxu0 0
    %558 = vmatprep.subr.bf16.mxu0 0
    %559 = vmatpush1.bf16.msra.mxu0 0
    %560 = vmatprep.subr.bf16.mxu0 0
    %561 = vmatpush1.bf16.msra.mxu0 0
    %562 = vmatprep.subr.bf16.mxu0 0
    %563 = vmatpush1.bf16.msra.mxu0 0
    %564 = vmatprep.subr.bf16.mxu0 0
    %565 = vmatpush1.bf16.msra.mxu0 0
    %566 = vmatprep.subr.bf16.mxu0 0
    %567 = vmatpush1.bf16.msra.mxu0 0
    %568 = vmatprep.subr.bf16.mxu0 0
    %569 = vmatpush1.bf16.msra.mxu0 0
    %570 = vmatprep.subr.bf16.mxu0 0
    %571 = vmatpush1.bf16.msra.mxu0 0
    %572 = vmatprep.subr.bf16.mxu0 0
    %573 = vmatpush1.bf16.msra.mxu0 0
    %574 = vmatprep.subr.bf16.mxu0 0
    %575 = vmatpush1.bf16.msra.mxu0 0
    %576 = vmatprep.subr.bf16.mxu0 0
    %577 = vmatpush1.bf16.msra.mxu0 0
    %578 = vmatprep.subr.bf16.mxu0 0
    %579 = vmatpush1.bf16.msra.mxu0 0
    %580 = vmatprep.subr.bf16.mxu0 0
    %581 = vmatpush1.bf16.msra.mxu0 0
    %582 = vmatprep.subr.bf16.mxu0 0
    %583 = vmatpush1.bf16.msra.mxu0 0
    %584 = vmatprep.subr.bf16.mxu0 0
    %585 = vmatpush1.bf16.msra.mxu0 0
    %586 = vmatprep.mubr.bf16.mxu0 0
    %587 = vmatmul.mubr.bf16.gmra.mrb[0].mxu0 %v552
    %v588 = vpop.f32.mrb[0].mxu0
    %v589 = vadd.f32 0.0, %v588
    %v590 = vpop.f32.mrb[0].mxu0
    %v591 = vpop.f32.mrb[0].mxu0
    %v592 = vadd.f32 0.0, %v591
    %v593 = vpop.f32.mrb[0].mxu0
    %594 = vdwg.mxu0
    %v595 = vpack.c.bf16 %v592, %v589
    %v597 = vsel %vm131, %v595, 0
    %v600 = vsel %vm380, %v41, 0
    %602 = vmatprep.subr.bf16.mxu0 0
    %603 = vmatpush1.bf16.msra.mxu0 %v600
    %604 = vmatprep.subr.bf16.mxu0 0
    %605 = vmatpush1.bf16.msra.mxu0 0
    %606 = vmatprep.subr.bf16.mxu0 0
    %607 = vmatpush1.bf16.msra.mxu0 0
    %608 = vmatprep.subr.bf16.mxu0 0
    %609 = vmatpush1.bf16.msra.mxu0 0
    %610 = vmatprep.subr.bf16.mxu0 0
    %611 = vmatpush1.bf16.msra.mxu0 0
    %612 = vmatprep.subr.bf16.mxu0 0
    %613 = vmatpush1.bf16.msra.mxu0 0
    %614 = vmatprep.subr.bf16.mxu0 0
    %615 = vmatpush1.bf16.msra.mxu0 0
    %616 = vmatprep.subr.bf16.mxu0 0
    %617 = vmatpush1.bf16.msra.mxu0 0
    %618 = vmatprep.subr.bf16.mxu0 0
    %619 = vmatpush1.bf16.msra.mxu0 0
    %620 = vmatprep.subr.bf16.mxu0 0
    %621 = vmatpush1.bf16.msra.mxu0 0
    %622 = vmatprep.subr.bf16.mxu0 0
    %623 = vmatpush1.bf16.msra.mxu0 0
    %624 = vmatprep.subr.bf16.mxu0 0
    %625 = vmatpush1.bf16.msra.mxu0 0
    %626 = vmatprep.subr.bf16.mxu0 0
    %627 = vmatpush1.bf16.msra.mxu0 0
    %628 = vmatprep.subr.bf16.mxu0 0
    %629 = vmatpush1.bf16.msra.mxu0 0
    %630 = vmatprep.subr.bf16.mxu0 0
    %631 = vmatpush1.bf16.msra.mxu0 0
    %632 = vmatprep.subr.bf16.mxu0 0
    %633 = vmatpush1.bf16.msra.mxu0 0
    %634 = vmatprep.mubr.bf16.mxu0 0
    %635 = vmatmul.mubr.bf16.gmra.mrb[0].mxu0 %v597
    %v636 = vpop.f32.mrb[0].mxu0
    %v637 = vadd.f32 0.0, %v636
    %v638 = vpop.f32.mrb[0].mxu0
    %v639 = vpop.f32.mrb[0].mxu0
    %v640 = vadd.f32 0.0, %v639
    %v641 = vpop.f32.mrb[0].mxu0
    %642 = vdwg.mxu0
    %v643 = vadd.f32 %v466, %v637
    %v644 = vadd.f32 %v469, %v640
    %645 = vrot.lane.b32.xlu0 %v127, 104
    %v646 = vpop.permute.xlu0 %645
    %647 = vrot.lane.b32.xlu0 %v127, 72
    %v648 = vpop.permute.xlu0 %647
    %v650 = vsel %vm131, %v646, 0
    %v653 = vsel %vm131, %v648, 0
    %655 = vmatprep.subr.bf16.mxu0 0
    %656 = vmatpush1.bf16.xpose.msra.mxu0 %v653
    %657 = vmatprep.subr.bf16.mxu0 0
    %658 = vmatpush1.bf16.xpose.msra.mxu0 0
    %659 = vmatprep.subr.bf16.mxu0 0
    %660 = vmatpush1.bf16.xpose.msra.mxu0 0
    %661 = vmatprep.subr.bf16.mxu0 0
    %662 = vmatpush1.bf16.xpose.msra.mxu0 0
    %663 = vmatprep.subr.bf16.mxu0 0
    %664 = vmatpush1.bf16.xpose.msra.mxu0 0
    %665 = vmatprep.subr.bf16.mxu0 0
    %666 = vmatpush1.bf16.xpose.msra.mxu0 0
    %667 = vmatprep.subr.bf16.mxu0 0
    %668 = vmatpush1.bf16.xpose.msra.mxu0 0
    %669 = vmatprep.subr.bf16.mxu0 0
    %670 = vmatpush1.bf16.xpose.msra.mxu0 0
    %671 = vmatprep.subr.bf16.mxu0 0
    %672 = vmatpush1.bf16.xpose.msra.mxu0 0
    %673 = vmatprep.subr.bf16.mxu0 0
    %674 = vmatpush1.bf16.xpose.msra.mxu0 0
    %675 = vmatprep.subr.bf16.mxu0 0
    %676 = vmatpush1.bf16.xpose.msra.mxu0 0
    %677 = vmatprep.subr.bf16.mxu0 0
    %678 = vmatpush1.bf16.xpose.msra.mxu0 0
    %679 = vmatprep.subr.bf16.mxu0 0
    %680 = vmatpush1.bf16.xpose.msra.mxu0 0
    %681 = vmatprep.subr.bf16.mxu0 0
    %682 = vmatpush1.bf16.xpose.msra.mxu0 0
    %683 = vmatprep.subr.bf16.mxu0 0
    %684 = vmatpush1.bf16.xpose.msra.mxu0 0
    %685 = vmatprep.subr.bf16.mxu0 0
    %686 = vmatpush1.bf16.xpose.msra.mxu0 0
    %687 = vmatprep.mubr.bf16.mxu0 0
    %688 = vmatmul.mubr.bf16.gmra.mrb[0].mxu0 %v650
    %v689 = vpop.f32.mrb[0].mxu0
    %v690 = vadd.f32 0.0, %v689
    %v691 = vpop.f32.mrb[0].mxu0
    %v692 = vpop.f32.mrb[0].mxu0
    %v693 = vadd.f32 0.0, %v692
    %v694 = vpop.f32.mrb[0].mxu0
    %695 = vdwg.mxu0
    %v696 = vsel %vm179, %v690, -inf
    %697 = vmax.xlane.f32.xlu0 %v696
    %v698 = vpop.xlane.xlu0 %697
    %v699 = vsel %vm179, %v693, -inf
    %700 = vmax.xlane.f32.xlu0 %v699
    %v701 = vpop.xlane.xlu0 %700
    %v702 = vsub.f32 %v690, %v698
    %v703 = vsub.f32 %v693, %v701
    %v704 = vmul.f32 %v702, 1.442695
    %v705 = vpow.pop %v704
    %v706 = vmul.f32 %v703, 1.442695
    %v707 = vpow.pop %v706
    %v708 = vmul.f32 %v705, %v67
    %v709 = vmul.f32 %v707, %v68
    %v710 = vsel %vm179, %v708, 0.0
    %711 = vadd.xlane.f32.xlu0 %v710
    %v712 = vpop.xlane.xlu0 %711
    %v713 = vsel %vm179, %v709, 0.0
    %714 = vadd.xlane.f32.xlu0 %v713
    %v715 = vpop.xlane.xlu0 %714
    %v716 = vrcp.pop %v712
    %v717 = vrcp.pop %v715
    %v718 = vmul.f32 %v708, %v716
    %v719 = vmul.f32 %v709, %v717
    %v720 = vpack.c.bf16 %v719, %v718
    %721 = vrot.lane.b32.xlu0 %v127, 40
    %v722 = vpop.permute.xlu0 %721
    %v725 = vsel %vm179, %v720, 0
    %727 = vmatprep.subr.bf16.mxu0 0
    %728 = vmatpush1.bf16.msra.mxu0 %v722
    %729 = vmatprep.subr.bf16.mxu0 0
    %730 = vmatpush1.bf16.msra.mxu0 0
    %731 = vmatprep.subr.bf16.mxu0 0
    %732 = vmatpush1.bf16.msra.mxu0 0
    %733 = vmatprep.subr.bf16.mxu0 0
    %734 = vmatpush1.bf16.msra.mxu0 0
    %735 = vmatprep.subr.bf16.mxu0 0
    %736 = vmatpush1.bf16.msra.mxu0 0
    %737 = vmatprep.subr.bf16.mxu0 0
    %738 = vmatpush1.bf16.msra.mxu0 0
    %739 = vmatprep.subr.bf16.mxu0 0
    %740 = vmatpush1.bf16.msra.mxu0 0
    %741 = vmatprep.subr.bf16.mxu0 0
    %742 = vmatpush1.bf16.msra.mxu0 0
    %743 = vmatprep.subr.bf16.mxu0 0
    %744 = vmatpush1.bf16.msra.mxu0 0
    %745 = vmatprep.subr.bf16.mxu0 0
    %746 = vmatpush1.bf16.msra.mxu0 0
    %747 = vmatprep.subr.bf16.mxu0 0
    %748 = vmatpush1.bf16.msra.mxu0 0
    %749 = vmatprep.subr.bf16.mxu0 0
    %750 = vmatpush1.bf16.msra.mxu0 0
    %751 = vmatprep.subr.bf16.mxu0 0
    %752 = vmatpush1.bf16.msra.mxu0 0
    %753 = vmatprep.subr.bf16.mxu0 0
    %754 = vmatpush1.bf16.msra.mxu0 0
    %755 = vmatprep.subr.bf16.mxu0 0
    %756 = vmatpush1.bf16.msra.mxu0 0
    %757 = vmatprep.subr.bf16.mxu0 0
    %758 = vmatpush1.bf16.msra.mxu0 0
    %759 = vmatprep.mubr.bf16.mxu0 0
    %760 = vmatmul.mubr.bf16.gmra.mrb[0].mxu0 %v725
    %v761 = vpop.f32.mrb[0].mxu0
    %v762 = vadd.f32 0.0, %v761
    %v763 = vpop.f32.mrb[0].mxu0
    %v764 = vpop.f32.mrb[0].mxu0
    %v765 = vadd.f32 0.0, %v764
    %v766 = vpop.f32.mrb[0].mxu0
    %767 = vdwg.mxu0
    %v768 = vpack.c.bf16 %v765, %v762
    %v770 = vsel %vm131, %v768, 0
    %v773 = vsel %vm380, %v42, 0
    %775 = vmatprep.subr.bf16.mxu0 0
    %776 = vmatpush1.bf16.msra.mxu0 %v773
    %777 = vmatprep.subr.bf16.mxu0 0
    %778 = vmatpush1.bf16.msra.mxu0 0
    %779 = vmatprep.subr.bf16.mxu0 0
    %780 = vmatpush1.bf16.msra.mxu0 0
    %781 = vmatprep.subr.bf16.mxu0 0
    %782 = vmatpush1.bf16.msra.mxu0 0
    %783 = vmatprep.subr.bf16.mxu0 0
    %784 = vmatpush1.bf16.msra.mxu0 0
    %785 = vmatprep.subr.bf16.mxu0 0
    %786 = vmatpush1.bf16.msra.mxu0 0
    %787 = vmatprep.subr.bf16.mxu0 0
    %788 = vmatpush1.bf16.msra.mxu0 0
    %789 = vmatprep.subr.bf16.mxu0 0
    %790 = vmatpush1.bf16.msra.mxu0 0
    %791 = vmatprep.subr.bf16.mxu0 0
    %792 = vmatpush1.bf16.msra.mxu0 0
    %793 = vmatprep.subr.bf16.mxu0 0
    %794 = vmatpush1.bf16.msra.mxu0 0
    %795 = vmatprep.subr.bf16.mxu0 0
    %796 = vmatpush1.bf16.msra.mxu0 0
    %797 = vmatprep.subr.bf16.mxu0 0
    %798 = vmatpush1.bf16.msra.mxu0 0
    %799 = vmatprep.subr.bf16.mxu0 0
    %800 = vmatpush1.bf16.msra.mxu0 0
    %801 = vmatprep.subr.bf16.mxu0 0
    %802 = vmatpush1.bf16.msra.mxu0 0
    %803 = vmatprep.subr.bf16.mxu0 0
    %804 = vmatpush1.bf16.msra.mxu0 0
    %805 = vmatprep.subr.bf16.mxu0 0
    %806 = vmatpush1.bf16.msra.mxu0 0
    %807 = vmatprep.mubr.bf16.mxu0 0
    %808 = vmatmul.mubr.bf16.gmra.mrb[0].mxu0 %v770
    %v809 = vpop.f32.mrb[0].mxu0
    %v810 = vadd.f32 0.0, %v809
    %v811 = vpop.f32.mrb[0].mxu0
    %v812 = vpop.f32.mrb[0].mxu0
    %v813 = vadd.f32 0.0, %v812
    %v814 = vpop.f32.mrb[0].mxu0
    %815 = vdwg.mxu0
    %v816 = vadd.f32 %v643, %v810
    %v817 = vadd.f32 %v644, %v813
    %v818 = vadd.f32 %v816, %v53
    %v819 = vadd.f32 %v817, %v54
    %v820 = vadd.f32 %v33, %v818
    %v821 = vadd.f32 %v34, %v819
    %v822 = vsel %vm82, %v820, 0.0
    %823 = vadd.xlane.f32.xlu0 %v822
    %v824 = vpop.xlane.xlu0 %823
    %v825 = vsel %vm82, %v821, 0.0
    %826 = vadd.xlane.f32.xlu0 %v825
    %v827 = vpop.xlane.xlu0 %826
    %v828 = vrcp.pop 32.0
    %v829 = vmul.f32 %v824, %v828
    %v830 = vmul.f32 %v827, %v828
    %v831 = vsub.f32 %v820, %v829
    %v832 = vsub.f32 %v821, %v830
    %v833 = vmul.f32 %v831, %v831
    %v834 = vmul.f32 %v832, %v832
    %v835 = vsel %vm82, %v833, 0.0
    %836 = vadd.xlane.f32.xlu0 %v835
    %v837 = vpop.xlane.xlu0 %836
    %v838 = vsel %vm82, %v834, 0.0
    %839 = vadd.xlane.f32.xlu0 %v838
    %v840 = vpop.xlane.xlu0 %839
    %v841 = vmul.f32 %v837, %v828
    %v842 = vmul.f32 %v840, %v828
    %v843 = vadd.f32 %v841, 1e-05
    %v844 = vadd.f32 %v842, 1e-05
    %v845 = vrsqrt.pop %v843
    %v846 = vrsqrt.pop %v844
    %v847 = vmul.f32 %v831, %v845
    %v848 = vmul.f32 %v832, %v846
    %v849 = vmul.f32 %v847, %v59
    %v850 = vmul.f32 %v848, %v60
    %v851 = vadd.f32 %v849, %v61
    %v852 = vadd.f32 %v850, %v62
    %v853 = vpack.c.bf16 %v852, %v851
    %v858 = vunpack.c.l.b16 %v43
    %v859 = vunpack.c.l.b16 %v44
    %v860 = vunpack.c.l.b16 %v45
    %v861 = vunpack.c.l.b16 %v46
    %v862 = vpack.c.b16 %v859, %v858
    %v863 = vpack.c.b16 %v861, %v860
    %v867 = vsel %vm82, %v853, 0
    %869 = vmatprep.subr.bf16.mxu0 0
    %870 = vmatpush1.bf16.msra.mxu0 %v862
    %871 = vmatprep.subr.bf16.mxu0 0
    %872 = vmatpush1.bf16.msra.mxu0 %v863
    %873 = vmatprep.subr.bf16.mxu0 0
    %874 = vmatpush1.bf16.msra.mxu0 0
    %875 = vmatprep.subr.bf16.mxu0 0
    %876 = vmatpush1.bf16.msra.mxu0 0
    %877 = vmatprep.subr.bf16.mxu0 0
    %878 = vmatpush1.bf16.msra.mxu0 0
    %879 = vmatprep.subr.bf16.mxu0 0
    %880 = vmatpush1.bf16.msra.mxu0 0
    %881 = vmatprep.subr.bf16.mxu0 0
    %882 = vmatpush1.bf16.msra.mxu0 0
    %883 = vmatprep.subr.bf16.mxu0 0
    %884 = vmatpush1.bf16.msra.mxu0 0
    %885 = vmatprep.subr.bf16.mxu0 0
    %886 = vmatpush1.bf16.msra.mxu0 0
    %887 = vmatprep.subr.bf16.mxu0 0
    %888 = vmatpush1.bf16.msra.mxu0 0
    %889 = vmatprep.subr.bf16.mxu0 0
    %890 = vmatpush1.bf16.msra.mxu0 0
    %891 = vmatprep.subr.bf16.mxu0 0
    %892 = vmatpush1.bf16.msra.mxu0 0
    %893 = vmatprep.subr.bf16.mxu0 0
    %894 = vmatpush1.bf16.msra.mxu0 0
    %895 = vmatprep.subr.bf16.mxu0 0
    %896 = vmatpush1.bf16.msra.mxu0 0
    %897 = vmatprep.subr.bf16.mxu0 0
    %898 = vmatpush1.bf16.msra.mxu0 0
    %899 = vmatprep.subr.bf16.mxu0 0
    %900 = vmatpush1.bf16.msra.mxu0 0
    %901 = vmatprep.mubr.bf16.mxu0 0
    %902 = vmatmul.mubr.bf16.gmra.mrb[0].mxu0 %v867
    %v903 = vpop.f32.mrb[0].mxu0
    %v904 = vadd.f32 %v55, %v903
    %v905 = vpop.f32.mrb[0].mxu0
    %v906 = vpop.f32.mrb[0].mxu0
    %v907 = vadd.f32 %v56, %v906
    %v908 = vpop.f32.mrb[0].mxu0
    %909 = vdwg.mxu0
    %v910 = vmax.f32 %v904, 0.0
    %v911 = vmax.f32 %v907, 0.0
    %v912 = vpack.c.bf16 %v911, %v910
    %v917 = vunpack.c.l.b16 %v47
    %v918 = vunpack.c.l.b16 %v48
    %v919 = vunpack.c.l.b16 %v49
    %v920 = vunpack.c.l.b16 %v50
    %v921 = vpack.c.b16 %v918, %v917
    %v922 = vpack.c.b16 %v920, %v919
    %v926 = vsel %vm82, %v912, 0
    %928 = vmatprep.subr.bf16.mxu0 0
    %929 = vmatpush1.bf16.msra.mxu0 %v921
    %930 = vmatprep.subr.bf16.mxu0 0
    %931 = vmatpush1.bf16.msra.mxu0 %v922
    %932 = vmatprep.subr.bf16.mxu0 0
    %933 = vmatpush1.bf16.msra.mxu0 0
    %934 = vmatprep.subr.bf16.mxu0 0
    %935 = vmatpush1.bf16.msra.mxu0 0
    %936 = vmatprep.subr.bf16.mxu0 0
    %937 = vmatpush1.bf16.msra.mxu0 0
    %938 = vmatprep.subr.bf16.mxu0 0
    %939 = vmatpush1.bf16.msra.mxu0 0
    %940 = vmatprep.subr.bf16.mxu0 0
    %941 = vmatpush1.bf16.msra.mxu0 0
    %942 = vmatprep.subr.bf16.mxu0 0
    %943 = vmatpush1.bf16.msra.mxu0 0
    %944 = vmatprep.subr.bf16.mxu0 0
    %945 = vmatpush1.bf16.msra.mxu0 0
    %946 = vmatprep.subr.bf16.mxu0 0
    %947 = vmatpush1.bf16.msra.mxu0 0
    %948 = vmatprep.subr.bf16.mxu0 0
    %949 = vmatpush1.bf16.msra.mxu0 0
    %950 = vmatprep.subr.bf16.mxu0 0
    %951 = vmatpush1.bf16.msra.mxu0 0
    %952 = vmatprep.subr.bf16.mxu0 0
    %953 = vmatpush1.bf16.msra.mxu0 0
    %954 = vmatprep.subr.bf16.mxu0 0
    %955 = vmatpush1.bf16.msra.mxu0 0
    %956 = vmatprep.subr.bf16.mxu0 0
    %957 = vmatpush1.bf16.msra.mxu0 0
    %958 = vmatprep.subr.bf16.mxu0 0
    %959 = vmatpush1.bf16.msra.mxu0 0
    %960 = vmatprep.mubr.bf16.mxu0 0
    %961 = vmatmul.mubr.bf16.gmra.mrb[0].mxu0 %v926
    %v962 = vpop.f32.mrb[0].mxu0
    %v963 = vadd.f32 %v57, %v962
    %v964 = vpop.f32.mrb[0].mxu0
    %v965 = vpop.f32.mrb[0].mxu0
    %v966 = vadd.f32 %v58, %v965
    %v967 = vpop.f32.mrb[0].mxu0
    %968 = vdwg.mxu0
    %v969 = vadd.f32 %v851, %v963
    %v970 = vadd.f32 %v852, %v966
    %v971 = vsel %vm82, %v969, 0.0
    %972 = vadd.xlane.f32.xlu0 %v971
    %v973 = vpop.xlane.xlu0 %972
    %v974 = vsel %vm82, %v970, 0.0
    %975 = vadd.xlane.f32.xlu0 %v974
    %v976 = vpop.xlane.xlu0 %975
    %v977 = vmul.f32 %v973, %v828
    %v978 = vmul.f32 %v976, %v828
    %v979 = vsub.f32 %v969, %v977
    %v980 = vsub.f32 %v970, %v978
    %v981 = vmul.f32 %v979, %v979
    %v982 = vmul.f32 %v980, %v980
    %v983 = vsel %vm82, %v981, 0.0
    %984 = vadd.xlane.f32.xlu0 %v983
    %v985 = vpop.xlane.xlu0 %984
    %v986 = vsel %vm82, %v982, 0.0
    %987 = vadd.xlane.f32.xlu0 %v986
    %v988 = vpop.xlane.xlu0 %987
    %v989 = vmul.f32 %v985, %v828
    %v990 = vmul.f32 %v988, %v828
    %v991 = vadd.f32 %v989, 1e-05
    %v992 = vadd.f32 %v990, 1e-05
    %v993 = vrsqrt.pop %v991
    %v994 = vrsqrt.pop %v992
    %v995 = vmul.f32 %v979, %v993
    %v996 = vmul.f32 %v980, %v994
    %v997 = vmul.f32 %v995, %v63
    %v998 = vmul.f32 %v996, %v64
    %v999 = vadd.f32 %v997, %v65
    %v1000 = vadd.f32 %v998, %v66
    %1001 = vst.msk [vmem:[#allocation5] sm:$0xff] %vm82, %v999
    %1002 = vst.msk [vmem:[#allocation5 + $0x8] sm:$0xff] %vm82, %v1000
    // Predicated region
    $region22: #{tpu_custom_call.1} parent=1 // pred_check
      _
    $region23: #{tpu_custom_call.1} parent=1 // pred_check_branch
      %1004 = sbr.rel (0) target = $region25
    $region24: #{tpu_custom_call.1} parent=1 // pred_region
      %s1006 = ssub.s32 256, 256
      %1007 = vsyncadd [#allocation4], %s1006
      %s1008 = sshll.u32 [#allocation5], 4
      %s1009 = int_to_ptr.vmem [resolvable:$true] %s1008
      %1014 = dma.vmem_to_hbm [thread:$0]  %s1009, 256, %s4, [#allocation4], 128, 128, 8
    $region25: #{tpu_custom_call.1} parent=1 // pred_fallthru
      _
    // Predicated region
    $region26: #{tpu_custom_call.1} parent=1 // pred_check
      _
    $region27: #{tpu_custom_call.1} parent=1 // pred_check_branch
      %1016 = sbr.rel (0) target = $region29
    $region28: #{tpu_custom_call.1} parent=1 // pred_region
      %1017 = dma.done [#allocation4], 256
    $region29: #{tpu_custom_call.1} parent=1 // pred_fallthru
      _
    %1018 = vsyncpa [#allocation3], 1
    %1019 = vsyncpa [#allocation4], 1

</llo_original>
